<compile_context>
chip_gen: v7x
topology: tpu7x:2x2x1
jax: 0.10.0
libtpu: 0.0.40
codegen_flags: <defaults>
</compile_context>

<pallas_src>
import functools

import jax
import jax.numpy as jnp
from jax import lax
from jax.experimental import pallas as pl
from jax.experimental.pallas import tpu as pltpu

LANE = 128
SUBLANE = 8
_EPS = 1e-5


def _round_up(n, m):
    return ((n + m - 1) // m) * m


# ---------------------------------------------------------------------------
# Fused kernel: all blocks, statically unrolled
# ---------------------------------------------------------------------------
def _fused_kernel(x_ref, w1_ref, b1_ref, w2_ref, b2_ref, g_ref, be_ref, o_ref,
                  *, douts, add_residual):
    """x_ref: (tile_b, DPAD); w*_ref: (NB, DPAD, DPAD); b*/g/be: (NB, 1, DPAD)."""
    x = x_ref[...].astype(jnp.float32)
    n_blocks = len(douts)

    # Static Python loop -> fully unrolled straight-line code; the scheduler
    # can overlap the next block's weight loads under the current MXU/VPU work.
    for i in range(n_blocks):
        w1 = w1_ref[i]          # (DPAD, DPAD)  (static index -> single load)
        b1 = b1_ref[i]          # (1, DPAD)
        w2 = w2_ref[i]
        b2 = b2_ref[i]
        g = g_ref[i]
        be = be_ref[i]

        # Linear1 + ReLU (MXU + VPU).  Padded columns of w1/b1 are zero, so
        # padded lanes of h are exactly zero.
        h = jnp.dot(x, w1, preferred_element_type=jnp.float32) + b1
        h = jnp.maximum(h, 0.0)

        # Linear2 (MXU)
        y = jnp.dot(h, w2, preferred_element_type=jnp.float32) + b2

        # LayerNorm over the TRUE feature width; padded lanes masked out of
        # the variance (they are already zero, so the sum for the mean is ok).
        dout = douts[i]
        inv_d = 1.0 / float(dout)
        lane_id = lax.broadcasted_iota(jnp.int32, y.shape, dimension=1)
        mask = (lane_id < dout).astype(jnp.float32)
        mean = jnp.sum(y, axis=-1, keepdims=True) * inv_d
        ctr = (y - mean) * mask
        var = jnp.sum(ctr * ctr, axis=-1, keepdims=True) * inv_d
        yn = ctr * lax.rsqrt(var + _EPS)
        yn = yn * g + be        # padded gamma/beta are zero -> padded lanes stay 0

        if add_residual[i]:     # static per-block flag (din == dout)
            yn = yn + x

        x = jnp.maximum(yn, 0.0)

    o_ref[...] = x.astype(o_ref.dtype)


# ---------------------------------------------------------------------------
# Parameter preprocessing (done ONCE): pad to lane-dense shapes and stack
# ---------------------------------------------------------------------------
def prepare_params(params, dims):
    dpad = _round_up(max(dims), LANE)
    nb = len(params)

    def pad_w(w):
        out = jnp.zeros((dpad, dpad), jnp.float32)
        return out.at[: w.shape[0], : w.shape[1]].set(w)

    def pad_v(v):
        out = jnp.zeros((1, dpad), jnp.float32)
        return out.at[0, : v.shape[0]].set(v)

    w1s = jnp.stack([pad_w(p["w1"]) for p in params])      # (NB, DPAD, DPAD)
    w2s = jnp.stack([pad_w(p["w2"]) for p in params])
    b1s = jnp.stack([pad_v(p["b1"]) for p in params])       # (NB, 1, DPAD)
    b2s = jnp.stack([pad_v(p["b2"]) for p in params])
    gs = jnp.stack([pad_v(p["gamma"]) for p in params])
    bes = jnp.stack([pad_v(p["beta"]) for p in params])

    douts = tuple(int(dims[i + 1]) for i in range(nb))
    add_res = tuple(bool(dims[i] == dims[i + 1]) for i in range(nb))
    return dict(w1=w1s, b1=b1s, w2=w2s, b2=b2s, gamma=gs, beta=bes,
                dpad=dpad, douts=douts, add_residual=add_res, nb=nb)


# ---------------------------------------------------------------------------
# Forward wrapper: one pallas_call for the whole network
# ---------------------------------------------------------------------------
def feature_resnet_forward(x, packed):
    dpad = packed["dpad"]
    nb = packed["nb"]
    douts = packed["douts"]
    add_res = packed["add_residual"]

    B, din = x.shape
    tile_b = 256 if B >= 256 else _round_up(B, SUBLANE)
    b_pad = _round_up(B, tile_b)

    # Lane- and sublane-pad the activation once (zeros in padded positions).
    x_p = jnp.zeros((b_pad, dpad), jnp.float32).at[:B, :din].set(x)

    kernel = functools.partial(_fused_kernel, douts=douts, add_residual=add_res)

    def full_spec(shape):
        return pl.BlockSpec(shape, lambda i: (0, 0, 0))

    out = pl.pallas_call(
        kernel,
        out_shape=jax.ShapeDtypeStruct((b_pad, dpad), jnp.float32),
        grid=(b_pad // tile_b,),
        in_specs=[
            pl.BlockSpec((tile_b, dpad), lambda i: (i, 0)),   # activation tiles
            full_spec((nb, dpad, dpad)),                      # w1 (resident)
            full_spec((nb, 1, dpad)),                         # b1
            full_spec((nb, dpad, dpad)),                      # w2
            full_spec((nb, 1, dpad)),                         # b2
            full_spec((nb, 1, dpad)),                         # gamma
            full_spec((nb, 1, dpad)),                         # beta
        ],
        out_specs=pl.BlockSpec((tile_b, dpad), lambda i: (i, 0)),
        compiler_params=pltpu.CompilerParams(
            dimension_semantics=("parallel",)),               # 2 TCs on v7x
    )(x_p, packed["w1"], packed["b1"], packed["w2"], packed["b2"],
      packed["gamma"], packed["beta"])

    # Slice back to the true batch / feature size.
    return out[:B, : douts[-1]]


# ---------------------------------------------------------------------------
# Synthetic parameters + pure-JAX reference
# ---------------------------------------------------------------------------
def init_feature_resnet_params(key, dims):
    params = []
    for i in range(len(dims) - 1):
        din, dout = dims[i], dims[i + 1]
        key, k1, k2, k3, k4 = jax.random.split(key, 5)
        w1 = jax.random.normal(k1, (din, dout), jnp.float32) * (1.0 / jnp.sqrt(din))
        b1 = jax.random.normal(k2, (dout,), jnp.float32) * 0.01
        w2 = jax.random.normal(k3, (dout, dout), jnp.float32) * (1.0 / jnp.sqrt(dout))
        b2 = jax.random.normal(k4, (dout,), jnp.float32) * 0.01
        gamma = jnp.ones((dout,), jnp.float32)   # LayerNorm default weight
        beta = jnp.zeros((dout,), jnp.float32)   # LayerNorm default bias
        params.append(dict(w1=w1, b1=b1, w2=w2, b2=b2, gamma=gamma, beta=beta))
    return params


def feature_resnet_reference(x, params, dims):
    for i, p in enumerate(params):
        residual = x
        h = jnp.maximum(x @ p["w1"] + p["b1"], 0.0)
        y = h @ p["w2"] + p["b2"]
        mean = jnp.mean(y, axis=-1, keepdims=True)
        var = jnp.mean((y - mean) ** 2, axis=-1, keepdims=True)
        yn = (y - mean) / jnp.sqrt(var + _EPS) * p["gamma"] + p["beta"]
        if yn.shape == residual.shape:
            yn = yn + residual
        x = jnp.maximum(yn, 0.0)
    return x


if __name__ == "__main__":
    # FeatureResNet(in_dim=32, dims=[32, 32, 64, 64], out_dim=64)
    # (in_dim / out_dim are unused by the torch module's forward as well)
    dims = [32, 32, 64, 64]
    B = 8

    key = jax.random.PRNGKey(0)
    key, kx = jax.random.split(key)
    x = jax.random.normal(kx, (B, dims[0]), jnp.float32)

    params = init_feature_resnet_params(key, dims)
    packed = prepare_params(params, dims)     # pad + stack ONCE

    out = feature_resnet_forward(x, packed)
    out = jax.block_until_ready(out)

    ref = feature_resnet_reference(x, params, dims)
    assert out.shape == (B, dims[-1])
    assert jnp.allclose(out, ref, atol=1e-4, rtol=1e-4), "mismatch vs reference"

    print("KERNEL_OK")
</pallas_src>

<mosaic_0001>
module attributes {stable_mosaic.version = 11 : i64} {
  func.func @_fused_kernel(%arg0: i32, %arg1: memref<8x128xf32, #tpu.memory_space<vmem>>, %arg2: memref<3x128x128xf32, #tpu.memory_space<vmem>>, %arg3: memref<3x1x128xf32, #tpu.memory_space<vmem>>, %arg4: memref<3x128x128xf32, #tpu.memory_space<vmem>>, %arg5: memref<3x1x128xf32, #tpu.memory_space<vmem>>, %arg6: memref<3x1x128xf32, #tpu.memory_space<vmem>>, %arg7: memref<3x1x128xf32, #tpu.memory_space<vmem>>, %arg8: memref<8x128xf32, #tpu.memory_space<vmem>>) attributes {dimension_semantics = [#tpu.dimension_semantics<parallel>], iteration_bounds = array<i64: 1>, scalar_prefetch = 0 : i64, scratch_operands = 0 : i64, tpu.core_type = #tpu.core_type<tc>, window_params = [{transform_indices = @transform_0, window_bounds = array<i64: 8, 128>}, {pipeline_mode = #tpu.pipeline_mode<synchronous>, transform_indices = @transform_1, window_bounds = array<i64: 3, 128, 128>}, {pipeline_mode = #tpu.pipeline_mode<synchronous>, transform_indices = @transform_2, window_bounds = array<i64: 3, 1, 128>}, {pipeline_mode = #tpu.pipeline_mode<synchronous>, transform_indices = @transform_3, window_bounds = array<i64: 3, 128, 128>}, {pipeline_mode = #tpu.pipeline_mode<synchronous>, transform_indices = @transform_4, window_bounds = array<i64: 3, 1, 128>}, {pipeline_mode = #tpu.pipeline_mode<synchronous>, transform_indices = @transform_5, window_bounds = array<i64: 3, 1, 128>}, {pipeline_mode = #tpu.pipeline_mode<synchronous>, transform_indices = @transform_6, window_bounds = array<i64: 3, 1, 128>}, {transform_indices = @transform_7, window_bounds = array<i64: 8, 128>}]} {
    %c0 = arith.constant 0 : index
    %c0_0 = arith.constant 0 : index
    %0 = vector.load %arg1[%c0, %c0_0] : memref<8x128xf32, #tpu.memory_space<vmem>>, vector<8x128xf32>
    %c0_1 = arith.constant 0 : index
    %c0_2 = arith.constant 0 : index
    %c0_3 = arith.constant 0 : index
    %1 = vector.load %arg2[%c0_1, %c0_2, %c0_3] : memref<3x128x128xf32, #tpu.memory_space<vmem>>, vector<1x128x128xf32>
    %2 = vector.shape_cast %1 : vector<1x128x128xf32> to vector<128x128xf32>
    %c0_4 = arith.constant 0 : index
    %c0_5 = arith.constant 0 : index
    %c0_6 = arith.constant 0 : index
    %3 = vector.load %arg3[%c0_4, %c0_5, %c0_6] : memref<3x1x128xf32, #tpu.memory_space<vmem>>, vector<1x1x128xf32>
    %4 = vector.shape_cast %3 : vector<1x1x128xf32> to vector<1x128xf32>
    %c0_7 = arith.constant 0 : index
    %c0_8 = arith.constant 0 : index
    %c0_9 = arith.constant 0 : index
    %5 = vector.load %arg4[%c0_7, %c0_8, %c0_9] : memref<3x128x128xf32, #tpu.memory_space<vmem>>, vector<1x128x128xf32>
    %6 = vector.shape_cast %5 : vector<1x128x128xf32> to vector<128x128xf32>
    %c0_10 = arith.constant 0 : index
    %c0_11 = arith.constant 0 : index
    %c0_12 = arith.constant 0 : index
    %7 = vector.load %arg5[%c0_10, %c0_11, %c0_12] : memref<3x1x128xf32, #tpu.memory_space<vmem>>, vector<1x1x128xf32>
    %8 = vector.shape_cast %7 : vector<1x1x128xf32> to vector<1x128xf32>
    %c0_13 = arith.constant 0 : index
    %c0_14 = arith.constant 0 : index
    %c0_15 = arith.constant 0 : index
    %9 = vector.load %arg6[%c0_13, %c0_14, %c0_15] : memref<3x1x128xf32, #tpu.memory_space<vmem>>, vector<1x1x128xf32>
    %10 = vector.shape_cast %9 : vector<1x1x128xf32> to vector<1x128xf32>
    %c0_16 = arith.constant 0 : index
    %c0_17 = arith.constant 0 : index
    %c0_18 = arith.constant 0 : index
    %11 = vector.load %arg7[%c0_16, %c0_17, %c0_18] : memref<3x1x128xf32, #tpu.memory_space<vmem>>, vector<1x1x128xf32>
    %12 = vector.shape_cast %11 : vector<1x1x128xf32> to vector<1x128xf32>
    %cst = arith.constant dense<0.000000e+00> : vector<8x128xf32>
    %13 = tpu.matmul %0, %2, %cst {dimension_numbers = #tpu.dot_dimension_numbers<[1], [0], [0], [1], [0, 0, 1, 1], [], []>} : vector<8x128xf32>, vector<128x128xf32>, vector<8x128xf32> -> vector<8x128xf32>
    %14 = vector.broadcast %4 : vector<1x128xf32> to vector<8x128xf32>
    %15 = arith.addf %13, %14 : vector<8x128xf32>
    %cst_19 = arith.constant 0.000000e+00 : f32
    %16 = vector.broadcast %cst_19 : f32 to vector<8x128xf32>
    %17 = arith.maximumf %15, %16 : vector<8x128xf32>
    %cst_20 = arith.constant dense<0.000000e+00> : vector<8x128xf32>
    %18 = tpu.matmul %17, %6, %cst_20 {dimension_numbers = #tpu.dot_dimension_numbers<[1], [0], [0], [1], [0, 0, 1, 1], [], []>} : vector<8x128xf32>, vector<128x128xf32>, vector<8x128xf32> -> vector<8x128xf32>
    %19 = vector.broadcast %8 : vector<1x128xf32> to vector<8x128xf32>
    %20 = arith.addf %18, %19 : vector<8x128xf32>
    %21 = tpu.iota {dimensions = array<i32: 1>} : vector<8x128xi32>
    %c32_i32 = arith.constant 32 : i32
    %22 = vector.broadcast %c32_i32 : i32 to vector<8x128xi32>
    %23 = arith.cmpi slt, %21, %22 : vector<8x128xi32>
    %24 = arith.extui %23 : vector<8x128xi1> to vector<8x128xi32>
    %25 = arith.sitofp %24 : vector<8x128xi32> to vector<8x128xf32>
    %cst_21 = arith.constant dense<0.000000e+00> : vector<8xf32>
    %26 = vector.multi_reduction <add>, %20, %cst_21 [1] : vector<8x128xf32> to vector<8xf32>
    %27 = vector.shape_cast %26 : vector<8xf32> to vector<8x1xf32>
    %cst_22 = arith.constant 3.125000e-02 : f32
    %28 = vector.broadcast %cst_22 : f32 to vector<8x1xf32>
    %29 = arith.mulf %27, %28 : vector<8x1xf32>
    %30 = vector.broadcast %29 : vector<8x1xf32> to vector<8x128xf32>
    %31 = arith.subf %20, %30 : vector<8x128xf32>
    %32 = arith.mulf %31, %25 : vector<8x128xf32>
    %33 = arith.mulf %32, %32 : vector<8x128xf32>
    %cst_23 = arith.constant dense<0.000000e+00> : vector<8xf32>
    %34 = vector.multi_reduction <add>, %33, %cst_23 [1] : vector<8x128xf32> to vector<8xf32>
    %35 = vector.shape_cast %34 : vector<8xf32> to vector<8x1xf32>
    %cst_24 = arith.constant 3.125000e-02 : f32
    %36 = vector.broadcast %cst_24 : f32 to vector<8x1xf32>
    %37 = arith.mulf %35, %36 : vector<8x1xf32>
    %cst_25 = arith.constant 9.99999974E-6 : f32
    %38 = vector.broadcast %cst_25 : f32 to vector<8x1xf32>
    %39 = arith.addf %37, %38 : vector<8x1xf32>
    %40 = math.rsqrt %39 : vector<8x1xf32>
    %41 = vector.broadcast %40 : vector<8x1xf32> to vector<8x128xf32>
    %42 = arith.mulf %32, %41 : vector<8x128xf32>
    %43 = vector.broadcast %10 : vector<1x128xf32> to vector<8x128xf32>
    %44 = arith.mulf %42, %43 : vector<8x128xf32>
    %45 = vector.broadcast %12 : vector<1x128xf32> to vector<8x128xf32>
    %46 = arith.addf %44, %45 : vector<8x128xf32>
    %47 = arith.addf %46, %0 : vector<8x128xf32>
    %cst_26 = arith.constant 0.000000e+00 : f32
    %48 = vector.broadcast %cst_26 : f32 to vector<8x128xf32>
    %49 = arith.maximumf %47, %48 : vector<8x128xf32>
    %c1 = arith.constant 1 : index
    %c0_27 = arith.constant 0 : index
    %c0_28 = arith.constant 0 : index
    %50 = vector.load %arg2[%c1, %c0_27, %c0_28] : memref<3x128x128xf32, #tpu.memory_space<vmem>>, vector<1x128x128xf32>
    %51 = vector.shape_cast %50 : vector<1x128x128xf32> to vector<128x128xf32>
    %c1_29 = arith.constant 1 : index
    %c0_30 = arith.constant 0 : index
    %c0_31 = arith.constant 0 : index
    %52 = vector.load %arg3[%c1_29, %c0_30, %c0_31] : memref<3x1x128xf32, #tpu.memory_space<vmem>>, vector<1x1x128xf32>
    %53 = vector.shape_cast %52 : vector<1x1x128xf32> to vector<1x128xf32>
    %c1_32 = arith.constant 1 : index
    %c0_33 = arith.constant 0 : index
    %c0_34 = arith.constant 0 : index
    %54 = vector.load %arg4[%c1_32, %c0_33, %c0_34] : memref<3x128x128xf32, #tpu.memory_space<vmem>>, vector<1x128x128xf32>
    %55 = vector.shape_cast %54 : vector<1x128x128xf32> to vector<128x128xf32>
    %c1_35 = arith.constant 1 : index
    %c0_36 = arith.constant 0 : index
    %c0_37 = arith.constant 0 : index
    %56 = vector.load %arg5[%c1_35, %c0_36, %c0_37] : memref<3x1x128xf32, #tpu.memory_space<vmem>>, vector<1x1x128xf32>
    %57 = vector.shape_cast %56 : vector<1x1x128xf32> to vector<1x128xf32>
    %c1_38 = arith.constant 1 : index
    %c0_39 = arith.constant 0 : index
    %c0_40 = arith.constant 0 : index
    %58 = vector.load %arg6[%c1_38, %c0_39, %c0_40] : memref<3x1x128xf32, #tpu.memory_space<vmem>>, vector<1x1x128xf32>
    %59 = vector.shape_cast %58 : vector<1x1x128xf32> to vector<1x128xf32>
    %c1_41 = arith.constant 1 : index
    %c0_42 = arith.constant 0 : index
    %c0_43 = arith.constant 0 : index
    %60 = vector.load %arg7[%c1_41, %c0_42, %c0_43] : memref<3x1x128xf32, #tpu.memory_space<vmem>>, vector<1x1x128xf32>
    %61 = vector.shape_cast %60 : vector<1x1x128xf32> to vector<1x128xf32>
    %cst_44 = arith.constant dense<0.000000e+00> : vector<8x128xf32>
    %62 = tpu.matmul %49, %51, %cst_44 {dimension_numbers = #tpu.dot_dimension_numbers<[1], [0], [0], [1], [0, 0, 1, 1], [], []>} : vector<8x128xf32>, vector<128x128xf32>, vector<8x128xf32> -> vector<8x128xf32>
    %63 = vector.broadcast %53 : vector<1x128xf32> to vector<8x128xf32>
    %64 = arith.addf %62, %63 : vector<8x128xf32>
    %cst_45 = arith.constant 0.000000e+00 : f32
    %65 = vector.broadcast %cst_45 : f32 to vector<8x128xf32>
    %66 = arith.maximumf %64, %65 : vector<8x128xf32>
    %cst_46 = arith.constant dense<0.000000e+00> : vector<8x128xf32>
    %67 = tpu.matmul %66, %55, %cst_46 {dimension_numbers = #tpu.dot_dimension_numbers<[1], [0], [0], [1], [0, 0, 1, 1], [], []>} : vector<8x128xf32>, vector<128x128xf32>, vector<8x128xf32> -> vector<8x128xf32>
    %68 = vector.broadcast %57 : vector<1x128xf32> to vector<8x128xf32>
    %69 = arith.addf %67, %68 : vector<8x128xf32>
    %70 = tpu.iota {dimensions = array<i32: 1>} : vector<8x128xi32>
    %c64_i32 = arith.constant 64 : i32
    %71 = vector.broadcast %c64_i32 : i32 to vector<8x128xi32>
    %72 = arith.cmpi slt, %70, %71 : vector<8x128xi32>
    %73 = arith.extui %72 : vector<8x128xi1> to vector<8x128xi32>
    %74 = arith.sitofp %73 : vector<8x128xi32> to vector<8x128xf32>
    %cst_47 = arith.constant dense<0.000000e+00> : vector<8xf32>
    %75 = vector.multi_reduction <add>, %69, %cst_47 [1] : vector<8x128xf32> to vector<8xf32>
    %76 = vector.shape_cast %75 : vector<8xf32> to vector<8x1xf32>
    %cst_48 = arith.constant 1.562500e-02 : f32
    %77 = vector.broadcast %cst_48 : f32 to vector<8x1xf32>
    %78 = arith.mulf %76, %77 : vector<8x1xf32>
    %79 = vector.broadcast %78 : vector<8x1xf32> to vector<8x128xf32>
    %80 = arith.subf %69, %79 : vector<8x128xf32>
    %81 = arith.mulf %80, %74 : vector<8x128xf32>
    %82 = arith.mulf %81, %81 : vector<8x128xf32>
    %cst_49 = arith.constant dense<0.000000e+00> : vector<8xf32>
    %83 = vector.multi_reduction <add>, %82, %cst_49 [1] : vector<8x128xf32> to vector<8xf32>
    %84 = vector.shape_cast %83 : vector<8xf32> to vector<8x1xf32>
    %cst_50 = arith.constant 1.562500e-02 : f32
    %85 = vector.broadcast %cst_50 : f32 to vector<8x1xf32>
    %86 = arith.mulf %84, %85 : vector<8x1xf32>
    %cst_51 = arith.constant 9.99999974E-6 : f32
    %87 = vector.broadcast %cst_51 : f32 to vector<8x1xf32>
    %88 = arith.addf %86, %87 : vector<8x1xf32>
    %89 = math.rsqrt %88 : vector<8x1xf32>
    %90 = vector.broadcast %89 : vector<8x1xf32> to vector<8x128xf32>
    %91 = arith.mulf %81, %90 : vector<8x128xf32>
    %92 = vector.broadcast %59 : vector<1x128xf32> to vector<8x128xf32>
    %93 = arith.mulf %91, %92 : vector<8x128xf32>
    %94 = vector.broadcast %61 : vector<1x128xf32> to vector<8x128xf32>
    %95 = arith.addf %93, %94 : vector<8x128xf32>
    %cst_52 = arith.constant 0.000000e+00 : f32
    %96 = vector.broadcast %cst_52 : f32 to vector<8x128xf32>
    %97 = arith.maximumf %95, %96 : vector<8x128xf32>
    %c2 = arith.constant 2 : index
    %c0_53 = arith.constant 0 : index
    %c0_54 = arith.constant 0 : index
    %98 = vector.load %arg2[%c2, %c0_53, %c0_54] : memref<3x128x128xf32, #tpu.memory_space<vmem>>, vector<1x128x128xf32>
    %99 = vector.shape_cast %98 : vector<1x128x128xf32> to vector<128x128xf32>
    %c2_55 = arith.constant 2 : index
    %c0_56 = arith.constant 0 : index
    %c0_57 = arith.constant 0 : index
    %100 = vector.load %arg3[%c2_55, %c0_56, %c0_57] : memref<3x1x128xf32, #tpu.memory_space<vmem>>, vector<1x1x128xf32>
    %101 = vector.shape_cast %100 : vector<1x1x128xf32> to vector<1x128xf32>
    %c2_58 = arith.constant 2 : index
    %c0_59 = arith.constant 0 : index
    %c0_60 = arith.constant 0 : index
    %102 = vector.load %arg4[%c2_58, %c0_59, %c0_60] : memref<3x128x128xf32, #tpu.memory_space<vmem>>, vector<1x128x128xf32>
    %103 = vector.shape_cast %102 : vector<1x128x128xf32> to vector<128x128xf32>
    %c2_61 = arith.constant 2 : index
    %c0_62 = arith.constant 0 : index
    %c0_63 = arith.constant 0 : index
    %104 = vector.load %arg5[%c2_61, %c0_62, %c0_63] : memref<3x1x128xf32, #tpu.memory_space<vmem>>, vector<1x1x128xf32>
    %105 = vector.shape_cast %104 : vector<1x1x128xf32> to vector<1x128xf32>
    %c2_64 = arith.constant 2 : index
    %c0_65 = arith.constant 0 : index
    %c0_66 = arith.constant 0 : index
    %106 = vector.load %arg6[%c2_64, %c0_65, %c0_66] : memref<3x1x128xf32, #tpu.memory_space<vmem>>, vector<1x1x128xf32>
    %107 = vector.shape_cast %106 : vector<1x1x128xf32> to vector<1x128xf32>
    %c2_67 = arith.constant 2 : index
    %c0_68 = arith.constant 0 : index
    %c0_69 = arith.constant 0 : index
    %108 = vector.load %arg7[%c2_67, %c0_68, %c0_69] : memref<3x1x128xf32, #tpu.memory_space<vmem>>, vector<1x1x128xf32>
    %109 = vector.shape_cast %108 : vector<1x1x128xf32> to vector<1x128xf32>
    %cst_70 = arith.constant dense<0.000000e+00> : vector<8x128xf32>
    %110 = tpu.matmul %97, %99, %cst_70 {dimension_numbers = #tpu.dot_dimension_numbers<[1], [0], [0], [1], [0, 0, 1, 1], [], []>} : vector<8x128xf32>, vector<128x128xf32>, vector<8x128xf32> -> vector<8x128xf32>
    %111 = vector.broadcast %101 : vector<1x128xf32> to vector<8x128xf32>
    %112 = arith.addf %110, %111 : vector<8x128xf32>
    %cst_71 = arith.constant 0.000000e+00 : f32
    %113 = vector.broadcast %cst_71 : f32 to vector<8x128xf32>
    %114 = arith.maximumf %112, %113 : vector<8x128xf32>
    %cst_72 = arith.constant dense<0.000000e+00> : vector<8x128xf32>
    %115 = tpu.matmul %114, %103, %cst_72 {dimension_numbers = #tpu.dot_dimension_numbers<[1], [0], [0], [1], [0, 0, 1, 1], [], []>} : vector<8x128xf32>, vector<128x128xf32>, vector<8x128xf32> -> vector<8x128xf32>
    %116 = vector.broadcast %105 : vector<1x128xf32> to vector<8x128xf32>
    %117 = arith.addf %115, %116 : vector<8x128xf32>
    %118 = tpu.iota {dimensions = array<i32: 1>} : vector<8x128xi32>
    %c64_i32_73 = arith.constant 64 : i32
    %119 = vector.broadcast %c64_i32_73 : i32 to vector<8x128xi32>
    %120 = arith.cmpi slt, %118, %119 : vector<8x128xi32>
    %121 = arith.extui %120 : vector<8x128xi1> to vector<8x128xi32>
    %122 = arith.sitofp %121 : vector<8x128xi32> to vector<8x128xf32>
    %cst_74 = arith.constant dense<0.000000e+00> : vector<8xf32>
    %123 = vector.multi_reduction <add>, %117, %cst_74 [1] : vector<8x128xf32> to vector<8xf32>
    %124 = vector.shape_cast %123 : vector<8xf32> to vector<8x1xf32>
    %cst_75 = arith.constant 1.562500e-02 : f32
    %125 = vector.broadcast %cst_75 : f32 to vector<8x1xf32>
    %126 = arith.mulf %124, %125 : vector<8x1xf32>
    %127 = vector.broadcast %126 : vector<8x1xf32> to vector<8x128xf32>
    %128 = arith.subf %117, %127 : vector<8x128xf32>
    %129 = arith.mulf %128, %122 : vector<8x128xf32>
    %130 = arith.mulf %129, %129 : vector<8x128xf32>
    %cst_76 = arith.constant dense<0.000000e+00> : vector<8xf32>
    %131 = vector.multi_reduction <add>, %130, %cst_76 [1] : vector<8x128xf32> to vector<8xf32>
    %132 = vector.shape_cast %131 : vector<8xf32> to vector<8x1xf32>
    %cst_77 = arith.constant 1.562500e-02 : f32
    %133 = vector.broadcast %cst_77 : f32 to vector<8x1xf32>
    %134 = arith.mulf %132, %133 : vector<8x1xf32>
    %cst_78 = arith.constant 9.99999974E-6 : f32
    %135 = vector.broadcast %cst_78 : f32 to vector<8x1xf32>
    %136 = arith.addf %134, %135 : vector<8x1xf32>
    %137 = math.rsqrt %136 : vector<8x1xf32>
    %138 = vector.broadcast %137 : vector<8x1xf32> to vector<8x128xf32>
    %139 = arith.mulf %129, %138 : vector<8x128xf32>
    %140 = vector.broadcast %107 : vector<1x128xf32> to vector<8x128xf32>
    %141 = arith.mulf %139, %140 : vector<8x128xf32>
    %142 = vector.broadcast %109 : vector<1x128xf32> to vector<8x128xf32>
    %143 = arith.addf %141, %142 : vector<8x128xf32>
    %144 = arith.addf %143, %97 : vector<8x128xf32>
    %cst_79 = arith.constant 0.000000e+00 : f32
    %145 = vector.broadcast %cst_79 : f32 to vector<8x128xf32>
    %146 = arith.maximumf %144, %145 : vector<8x128xf32>
    %c0_80 = arith.constant 0 : index
    %c0_81 = arith.constant 0 : index
    %147 = vector.load %arg8[%c0_80, %c0_81] : memref<8x128xf32, #tpu.memory_space<vmem>>, vector<8x128xf32>
    tpu.vector_store %arg8[%c0_80, %c0_81], %146 {strides = array<i32>} : memref<8x128xf32, #tpu.memory_space<vmem>>, vector<8x128xf32>,
    return
  }
  func.func @transform_0(%arg0: i32) -> (i32, i32) {
    %c0_i32 = arith.constant 0 : i32
    %c0_i32_0 = arith.constant 0 : i32
    return %arg0, %c0_i32 : i32, i32
  }
  func.func @transform_1(%arg0: i32) -> (i32, i32, i32) {
    %c0_i32 = arith.constant 0 : i32
    %c0_i32_0 = arith.constant 0 : i32
    %c0_i32_1 = arith.constant 0 : i32
    %c0_i32_2 = arith.constant 0 : i32
    return %c0_i32, %c0_i32_0, %c0_i32_1 : i32, i32, i32
  }
  func.func @transform_2(%arg0: i32) -> (i32, i32, i32) {
    %c0_i32 = arith.constant 0 : i32
    %c0_i32_0 = arith.constant 0 : i32
    %c0_i32_1 = arith.constant 0 : i32
    %c0_i32_2 = arith.constant 0 : i32
    return %c0_i32, %c0_i32_0, %c0_i32_1 : i32, i32, i32
  }
  func.func @transform_3(%arg0: i32) -> (i32, i32, i32) {
    %c0_i32 = arith.constant 0 : i32
    %c0_i32_0 = arith.constant 0 : i32
    %c0_i32_1 = arith.constant 0 : i32
    %c0_i32_2 = arith.constant 0 : i32
    return %c0_i32, %c0_i32_0, %c0_i32_1 : i32, i32, i32
  }
  func.func @transform_4(%arg0: i32) -> (i32, i32, i32) {
    %c0_i32 = arith.constant 0 : i32
    %c0_i32_0 = arith.constant 0 : i32
    %c0_i32_1 = arith.constant 0 : i32
    %c0_i32_2 = arith.constant 0 : i32
    return %c0_i32, %c0_i32_0, %c0_i32_1 : i32, i32, i32
  }
  func.func @transform_5(%arg0: i32) -> (i32, i32, i32) {
    %c0_i32 = arith.constant 0 : i32
    %c0_i32_0 = arith.constant 0 : i32
    %c0_i32_1 = arith.constant 0 : i32
    %c0_i32_2 = arith.constant 0 : i32
    return %c0_i32, %c0_i32_0, %c0_i32_1 : i32, i32, i32
  }
  func.func @transform_6(%arg0: i32) -> (i32, i32, i32) {
    %c0_i32 = arith.constant 0 : i32
    %c0_i32_0 = arith.constant 0 : i32
    %c0_i32_1 = arith.constant 0 : i32
    %c0_i32_2 = arith.constant 0 : i32
    return %c0_i32, %c0_i32_0, %c0_i32_1 : i32, i32, i32
  }
  func.func @transform_7(%arg0: i32) -> (i32, i32) {
    %c0_i32 = arith.constant 0 : i32
    %c0_i32_0 = arith.constant 0 : i32
    return %arg0, %c0_i32 : i32, i32
  }
}

</mosaic_0001>

<llo_original>
// kernel: tpu_custom_call.1
$region0: #{tpu_custom_call.1}
  #allocation0 [shape = 'u32[]', space=smem, size = 0x4, offset = 0x4, fixed_abs, tag = 'smem constant byte address 0x4 - core index']
  #allocation1 [shape = 'u32[144,128]{1,0:T(1,128)}', space=vmem, size = 0x12000, scoped, tag = 'internal scratch']
  %s0 = inlined_call_operand.hbm [shape: f32[8,128], index: 0, kind: input, shape index: {}]
  %s1 = inlined_call_operand.hbm [shape: f32[3,128,128], index: 1, kind: input, shape index: {}]
  %s2 = inlined_call_operand.vmem [shape: f32[3,1,128], index: 2, kind: input, shape index: {}]
  %s3 = inlined_call_operand.hbm [shape: f32[3,128,128], index: 3, kind: input, shape index: {}]
  %s4 = inlined_call_operand.vmem [shape: f32[3,1,128], index: 4, kind: input, shape index: {}]
  %s5 = inlined_call_operand.vmem [shape: f32[3,1,128], index: 5, kind: input, shape index: {}]
  %s6 = inlined_call_operand.vmem [shape: f32[3,1,128], index: 6, kind: input, shape index: {}]
  %s7 = inlined_call_operand.hbm [shape: f32[8,128], index: 7, kind: output, shape index: {}]
  %s8 = sld [smem:[#allocation0]]
  $region50: #{tpu_custom_call.1} parent=0
    _
  %s10 = ssub.s32 1, %s8
  %s11 = scalar_select 0, %s10, %s8
  $region1: #{tpu_custom_call.1} parent=0
    #allocation2 [shape = 'u8[4096]{0}', space=vmem, size = 0x1000, scoped, tag = 'input window, operand 0, single buffered']
    #allocation3 [shape = 's32[1]{0}', space=sflag, size = 0x4, scoped, tag = 'scoped memory for tpu_custom_call.1']
    #allocation4 [shape = 's32[1]{0}', space=sflag, size = 0x4, scoped, tag = 'scoped memory for tpu_custom_call.1']
    #allocation5 [shape = 'u8[196608]{0}', space=vmem, size = 0x30000, scoped, tag = 'input window, operand 1, single buffered']
    #allocation6 [shape = 's32[1]{0}', space=sflag, size = 0x4, scoped, tag = 'scoped memory for tpu_custom_call.1']
    #allocation7 [shape = 'u8[196608]{0}', space=vmem, size = 0x30000, scoped, tag = 'input window, operand 3, single buffered']
    #allocation8 [shape = 'u8[4096]{0}', space=vmem, size = 0x1000, scoped, tag = 'output window, operand 0, single buffered']
    %12 = vsyncpa [#allocation3], 0
    %13 = vsyncpa [#allocation6], 0
    %14 = vsyncpa [#allocation4], 0
    // Predicated region
    $region2: #{tpu_custom_call.1} parent=1 // pred_check
      _
    $region3: #{tpu_custom_call.1} parent=1 // pred_check_branch
      %16 = sbr.rel (0) target = $region5
    $region4: #{tpu_custom_call.1} parent=1 // pred_region
      %s18 = ssub.s32 128, 128
      %19 = vsyncadd [#allocation3], %s18
      %s21 = sshll.u32 [#allocation2], 4
      %s22 = int_to_ptr.vmem [resolvable:$true] %s21
      %24 = dma.hbm_to_vmem [thread:$0]  %s0, 128, %s22, [#allocation3]
    $region5: #{tpu_custom_call.1} parent=1 // pred_fallthru
      _
    // Predicated region
    $region6: #{tpu_custom_call.1} parent=1 // pred_check
      _
    $region7: #{tpu_custom_call.1} parent=1 // pred_check_branch
      %26 = sbr.rel (0) target = $region9
    $region8: #{tpu_custom_call.1} parent=1 // pred_region
      %s28 = ssub.s32 6144, 6144
      %29 = vsyncadd [#allocation6], %s28
      %s30 = sshll.u32 [#allocation5], 4
      %s31 = int_to_ptr.vmem [resolvable:$true] %s30
      %36 = dma.hbm_to_vmem [thread:$0]  %s1, 6144, %s31, [#allocation6], 128, 128, 8
    $region9: #{tpu_custom_call.1} parent=1 // pred_fallthru
      _
    // Predicated region
    $region10: #{tpu_custom_call.1} parent=1 // pred_check
      _
    $region11: #{tpu_custom_call.1} parent=1 // pred_check_branch
      %38 = sbr.rel (0) target = $region13
    $region12: #{tpu_custom_call.1} parent=1 // pred_region
      _
    $region13: #{tpu_custom_call.1} parent=1 // pred_fallthru
      _
    // Predicated region
    $region14: #{tpu_custom_call.1} parent=1 // pred_check
      _
    $region15: #{tpu_custom_call.1} parent=1 // pred_check_branch
      %40 = sbr.rel (0) target = $region17
    $region16: #{tpu_custom_call.1} parent=1 // pred_region
      %s42 = ssub.s32 6144, 6144
      %43 = vsyncadd [#allocation6], %s42
      %s44 = sshll.u32 [#allocation7], 4
      %s45 = int_to_ptr.vmem [resolvable:$true] %s44
      %50 = dma.hbm_to_vmem [thread:$0]  %s3, 6144, %s45, [#allocation6], 128, 128, 8
    $region17: #{tpu_custom_call.1} parent=1 // pred_fallthru
      _
    // Predicated region
    $region18: #{tpu_custom_call.1} parent=1 // pred_check
      _
    $region19: #{tpu_custom_call.1} parent=1 // pred_check_branch
      %52 = sbr.rel (0) target = $region21
    $region20: #{tpu_custom_call.1} parent=1 // pred_region
      _
    $region21: #{tpu_custom_call.1} parent=1 // pred_fallthru
      _
    // Predicated region
    $region22: #{tpu_custom_call.1} parent=1 // pred_check
      _
    $region23: #{tpu_custom_call.1} parent=1 // pred_check_branch
      %54 = sbr.rel (0) target = $region25
    $region24: #{tpu_custom_call.1} parent=1 // pred_region
      _
    $region25: #{tpu_custom_call.1} parent=1 // pred_fallthru
      _
    // Predicated region
    $region26: #{tpu_custom_call.1} parent=1 // pred_check
      _
    $region27: #{tpu_custom_call.1} parent=1 // pred_check_branch
      %56 = sbr.rel (0) target = $region29
    $region28: #{tpu_custom_call.1} parent=1 // pred_region
      _
    $region29: #{tpu_custom_call.1} parent=1 // pred_fallthru
      _
    // Predicated region
    $region30: #{tpu_custom_call.1} parent=1 // pred_check
      _
    $region31: #{tpu_custom_call.1} parent=1 // pred_check_branch
      %58 = sbr.rel (0) target = $region33
    $region32: #{tpu_custom_call.1} parent=1 // pred_region
      %59 = dma.done [#allocation3], 128
    $region33: #{tpu_custom_call.1} parent=1 // pred_fallthru
      _
    // Predicated region
    $region34: #{tpu_custom_call.1} parent=1 // pred_check
      _
    $region35: #{tpu_custom_call.1} parent=1 // pred_check_branch
      %61 = sbr.rel (0) target = $region37
    $region36: #{tpu_custom_call.1} parent=1 // pred_region
      %62 = dma.done [#allocation6], 6144
    $region37: #{tpu_custom_call.1} parent=1 // pred_fallthru
      _
    // Predicated region
    $region38: #{tpu_custom_call.1} parent=1 // pred_check
      _
    $region39: #{tpu_custom_call.1} parent=1 // pred_check_branch
      %64 = sbr.rel (0) target = $region41
    $region40: #{tpu_custom_call.1} parent=1 // pred_region
      %65 = dma.done [#allocation6], 6144
    $region41: #{tpu_custom_call.1} parent=1 // pred_fallthru
      _
    %v66 = vld [vmem:[#allocation2] sm:$0xff]
    %v67 = vld [vmem:[#allocation5] sm:$0xff]
    %v68 = vld [vmem:[#allocation5 + $0x8] sm:$0xff]
    %v69 = vld [vmem:[#allocation5 + $0x10] sm:$0xff]
    %v70 = vld [vmem:[#allocation5 + $0x18] sm:$0xff]
    %v71 = vld [vmem:[#allocation5 + $0x20] sm:$0xff]
    %v72 = vld [vmem:[#allocation5 + $0x28] sm:$0xff]
    %v73 = vld [vmem:[#allocation5 + $0x30] sm:$0xff]
    %v74 = vld [vmem:[#allocation5 + $0x38] sm:$0xff]
    %v75 = vld [vmem:[#allocation5 + $0x40] sm:$0xff]
    %v76 = vld [vmem:[#allocation5 + $0x48] sm:$0xff]
    %v77 = vld [vmem:[#allocation5 + $0x50] sm:$0xff]
    %v78 = vld [vmem:[#allocation5 + $0x58] sm:$0xff]
    %v79 = vld [vmem:[#allocation5 + $0x60] sm:$0xff]
    %v80 = vld [vmem:[#allocation5 + $0x68] sm:$0xff]
    %v81 = vld [vmem:[#allocation5 + $0x70] sm:$0xff]
    %v82 = vld [vmem:[#allocation5 + $0x78] sm:$0xff]
    %v83 = vld [vmem:[%s2] sm:$0x1]
    %v84 = vld [vmem:[#allocation7] sm:$0xff]
    %v85 = vld [vmem:[#allocation7 + $0x8] sm:$0xff]
    %v86 = vld [vmem:[#allocation7 + $0x10] sm:$0xff]
    %v87 = vld [vmem:[#allocation7 + $0x18] sm:$0xff]
    %v88 = vld [vmem:[#allocation7 + $0x20] sm:$0xff]
    %v89 = vld [vmem:[#allocation7 + $0x28] sm:$0xff]
    %v90 = vld [vmem:[#allocation7 + $0x30] sm:$0xff]
    %v91 = vld [vmem:[#allocation7 + $0x38] sm:$0xff]
    %v92 = vld [vmem:[#allocation7 + $0x40] sm:$0xff]
    %v93 = vld [vmem:[#allocation7 + $0x48] sm:$0xff]
    %v94 = vld [vmem:[#allocation7 + $0x50] sm:$0xff]
    %v95 = vld [vmem:[#allocation7 + $0x58] sm:$0xff]
    %v96 = vld [vmem:[#allocation7 + $0x60] sm:$0xff]
    %v97 = vld [vmem:[#allocation7 + $0x68] sm:$0xff]
    %v98 = vld [vmem:[#allocation7 + $0x70] sm:$0xff]
    %v99 = vld [vmem:[#allocation7 + $0x78] sm:$0xff]
    %v100 = vld [vmem:[%s4] sm:$0x1]
    %v101 = vld [vmem:[%s5] sm:$0x1]
    %v102 = vld [vmem:[%s6] sm:$0x1]
    %v104 = vlaneseq
    %v105 = vshrl.u32 %v104, 7
    %v106 = vsub.s32 0, %v105
    %v107 = vrot.slane %v83, %v106
    %109 = vmatprep.subr.mxu0 0.0
    %110 = vmatpush1.msra.mxu0 %v67
    %111 = vmatprep.subr.mxu0 0.0
    %112 = vmatpush1.msra.mxu0 %v68
    %113 = vmatprep.subr.mxu0 0.0
    %114 = vmatpush1.msra.mxu0 %v69
    %115 = vmatprep.subr.mxu0 0.0
    %116 = vmatpush1.msra.mxu0 %v70
    %117 = vmatprep.subr.mxu0 0.0
    %118 = vmatpush1.msra.mxu0 %v71
    %119 = vmatprep.subr.mxu0 0.0
    %120 = vmatpush1.msra.mxu0 %v72
    %121 = vmatprep.subr.mxu0 0.0
    %122 = vmatpush1.msra.mxu0 %v73
    %123 = vmatprep.subr.mxu0 0.0
    %124 = vmatpush1.msra.mxu0 %v74
    %125 = vmatprep.subr.mxu0 0.0
    %126 = vmatpush1.msra.mxu0 %v75
    %127 = vmatprep.subr.mxu0 0.0
    %128 = vmatpush1.msra.mxu0 %v76
    %129 = vmatprep.subr.mxu0 0.0
    %130 = vmatpush1.msra.mxu0 %v77
    %131 = vmatprep.subr.mxu0 0.0
    %132 = vmatpush1.msra.mxu0 %v78
    %133 = vmatprep.subr.mxu0 0.0
    %134 = vmatpush1.msra.mxu0 %v79
    %135 = vmatprep.subr.mxu0 0.0
    %136 = vmatpush1.msra.mxu0 %v80
    %137 = vmatprep.subr.mxu0 0.0
    %138 = vmatpush1.msra.mxu0 %v81
    %139 = vmatprep.subr.mxu0 0.0
    %140 = vmatpush1.msra.mxu0 %v82
    %141 = vmatprep.subr.mxu0 0.0
    %142 = vmatpush1.msra.mxu0 0.0
    %143 = vmatprep.subr.mxu0 0.0
    %144 = vmatpush1.msra.mxu0 0.0
    %145 = vmatprep.subr.mxu0 0.0
    %146 = vmatpush1.msra.mxu0 0.0
    %147 = vmatprep.subr.mxu0 0.0
    %148 = vmatpush1.msra.mxu0 0.0
    %149 = vmatprep.subr.mxu0 0.0
    %150 = vmatpush1.msra.mxu0 0.0
    %151 = vmatprep.subr.mxu0 0.0
    %152 = vmatpush1.msra.mxu0 0.0
    %153 = vmatprep.subr.mxu0 0.0
    %154 = vmatpush1.msra.mxu0 0.0
    %155 = vmatprep.subr.mxu0 0.0
    %156 = vmatpush1.msra.mxu0 0.0
    %157 = vmatprep.subr.mxu0 0.0
    %158 = vmatpush1.msra.mxu0 0.0
    %159 = vmatprep.subr.mxu0 0.0
    %160 = vmatpush1.msra.mxu0 0.0
    %161 = vmatprep.subr.mxu0 0.0
    %162 = vmatpush1.msra.mxu0 0.0
    %163 = vmatprep.subr.mxu0 0.0
    %164 = vmatpush1.msra.mxu0 0.0
    %165 = vmatprep.subr.mxu0 0.0
    %166 = vmatpush1.msra.mxu0 0.0
    %167 = vmatprep.subr.mxu0 0.0
    %168 = vmatpush1.msra.mxu0 0.0
    %169 = vmatprep.subr.mxu0 0.0
    %170 = vmatpush1.msra.mxu0 0.0
    %171 = vmatprep.subr.mxu0 0.0
    %172 = vmatpush1.msra.mxu0 0.0
    %173 = vmatprep.mubr.f32.mxu0 0.0
    %174 = vmatmul.mubr.f32.gmra.mrb[0].mxu0 %v66
    %v175 = vpop.f32.mrb[0].mxu0
    %v176 = vadd.f32 %v107, %v175
    %v177 = vpop.f32.mrb[0].mxu0
    %178 = vdwg.mxu0
    %v179 = vmax.f32 %v176, 0.0
    %v181 = vlaneseq
    %v182 = vshrl.u32 %v181, 7
    %v183 = vsub.s32 0, %v182
    %v184 = vrot.slane %v100, %v183
    %186 = vmatprep.subr.mxu0 0.0
    %187 = vmatpush1.msra.mxu0 %v84
    %188 = vmatprep.subr.mxu0 0.0
    %189 = vmatpush1.msra.mxu0 %v85
    %190 = vmatprep.subr.mxu0 0.0
    %191 = vmatpush1.msra.mxu0 %v86
    %192 = vmatprep.subr.mxu0 0.0
    %193 = vmatpush1.msra.mxu0 %v87
    %194 = vmatprep.subr.mxu0 0.0
    %195 = vmatpush1.msra.mxu0 %v88
    %196 = vmatprep.subr.mxu0 0.0
    %197 = vmatpush1.msra.mxu0 %v89
    %198 = vmatprep.subr.mxu0 0.0
    %199 = vmatpush1.msra.mxu0 %v90
    %200 = vmatprep.subr.mxu0 0.0
    %201 = vmatpush1.msra.mxu0 %v91
    %202 = vmatprep.subr.mxu0 0.0
    %203 = vmatpush1.msra.mxu0 %v92
    %204 = vmatprep.subr.mxu0 0.0
    %205 = vmatpush1.msra.mxu0 %v93
    %206 = vmatprep.subr.mxu0 0.0
    %207 = vmatpush1.msra.mxu0 %v94
    %208 = vmatprep.subr.mxu0 0.0
    %209 = vmatpush1.msra.mxu0 %v95
    %210 = vmatprep.subr.mxu0 0.0
    %211 = vmatpush1.msra.mxu0 %v96
    %212 = vmatprep.subr.mxu0 0.0
    %213 = vmatpush1.msra.mxu0 %v97
    %214 = vmatprep.subr.mxu0 0.0
    %215 = vmatpush1.msra.mxu0 %v98
    %216 = vmatprep.subr.mxu0 0.0
    %217 = vmatpush1.msra.mxu0 %v99
    %218 = vmatprep.subr.mxu0 0.0
    %219 = vmatpush1.msra.mxu0 0.0
    %220 = vmatprep.subr.mxu0 0.0
    %221 = vmatpush1.msra.mxu0 0.0
    %222 = vmatprep.subr.mxu0 0.0
    %223 = vmatpush1.msra.mxu0 0.0
    %224 = vmatprep.subr.mxu0 0.0
    %225 = vmatpush1.msra.mxu0 0.0
    %226 = vmatprep.subr.mxu0 0.0
    %227 = vmatpush1.msra.mxu0 0.0
    %228 = vmatprep.subr.mxu0 0.0
    %229 = vmatpush1.msra.mxu0 0.0
    %230 = vmatprep.subr.mxu0 0.0
    %231 = vmatpush1.msra.mxu0 0.0
    %232 = vmatprep.subr.mxu0 0.0
    %233 = vmatpush1.msra.mxu0 0.0
    %234 = vmatprep.subr.mxu0 0.0
    %235 = vmatpush1.msra.mxu0 0.0
    %236 = vmatprep.subr.mxu0 0.0
    %237 = vmatpush1.msra.mxu0 0.0
    %238 = vmatprep.subr.mxu0 0.0
    %239 = vmatpush1.msra.mxu0 0.0
    %240 = vmatprep.subr.mxu0 0.0
    %241 = vmatpush1.msra.mxu0 0.0
    %242 = vmatprep.subr.mxu0 0.0
    %243 = vmatpush1.msra.mxu0 0.0
    %244 = vmatprep.subr.mxu0 0.0
    %245 = vmatpush1.msra.mxu0 0.0
    %246 = vmatprep.subr.mxu0 0.0
    %247 = vmatpush1.msra.mxu0 0.0
    %248 = vmatprep.subr.mxu0 0.0
    %249 = vmatpush1.msra.mxu0 0.0
    %250 = vmatprep.mubr.f32.mxu0 0.0
    %251 = vmatmul.mubr.f32.gmra.mrb[0].mxu0 %v179
    %v252 = vpop.f32.mrb[0].mxu0
    %v253 = vadd.f32 %v184, %v252
    %v254 = vpop.f32.mrb[0].mxu0
    %255 = vdwg.mxu0
    %v256 = vlaneseq
    %v257 = vand.u32 %v256, 127
    %vm258 = vcmp.lt.s32.totalorder %v257, 32
    %v259 = vsel %vm258, 1, 0
    %v260 = vcvt.s32.f32 %v259
    %261 = vadd.xlane.f32.xlu0 %v253
    %v262 = vpop.xlane.xlu0 %261
    %v263 = vmul.f32 %v262, 0.03125
    %v264 = vsub.f32 %v253, %v263
    %v265 = vmul.f32 %v264, %v260
    %v266 = vmul.f32 %v265, %v265
    %267 = vadd.xlane.f32.xlu0 %v266
    %v268 = vpop.xlane.xlu0 %267
    %v269 = vmul.f32 %v268, 0.03125
    %v270 = vadd.f32 %v269, 1e-05
    %v271 = vrsqrt.pop %v270
    %v272 = vmul.f32 %v265, %v271
    %v274 = vlaneseq
    %v275 = vshrl.u32 %v274, 7
    %v276 = vsub.s32 0, %v275
    %v277 = vrot.slane %v101, %v276
    %v279 = vmul.f32 %v272, %v277
    %v281 = vlaneseq
    %v282 = vshrl.u32 %v281, 7
    %v283 = vsub.s32 0, %v282
    %v284 = vrot.slane %v102, %v283
    %v286 = vadd.f32 %v279, %v284
    %v287 = vadd.f32 %v286, %v66
    %v288 = vmax.f32 %v287, 0.0
    %s289 = scalar_lea.vmem [#allocation5], 128
    %v290 = vld [vmem:[%s289] sm:$0xff]
    %v291 = vld [vmem:[%s289 + $0x8] sm:$0xff]
    %v292 = vld [vmem:[%s289 + $0x10] sm:$0xff]
    %v293 = vld [vmem:[%s289 + $0x18] sm:$0xff]
    %v294 = vld [vmem:[%s289 + $0x20] sm:$0xff]
    %v295 = vld [vmem:[%s289 + $0x28] sm:$0xff]
    %v296 = vld [vmem:[%s289 + $0x30] sm:$0xff]
    %v297 = vld [vmem:[%s289 + $0x38] sm:$0xff]
    %v298 = vld [vmem:[%s289 + $0x40] sm:$0xff]
    %v299 = vld [vmem:[%s289 + $0x48] sm:$0xff]
    %v300 = vld [vmem:[%s289 + $0x50] sm:$0xff]
    %v301 = vld [vmem:[%s289 + $0x58] sm:$0xff]
    %v302 = vld [vmem:[%s289 + $0x60] sm:$0xff]
    %v303 = vld [vmem:[%s289 + $0x68] sm:$0xff]
    %v304 = vld [vmem:[%s289 + $0x70] sm:$0xff]
    %v305 = vld [vmem:[%s289 + $0x78] sm:$0xff]
    %s306 = scalar_lea.vmem %s2, 1
    %v307 = vld [vmem:[%s306] sm:$0x1]
    %s308 = scalar_lea.vmem [#allocation7], 128
    %v309 = vld [vmem:[%s308] sm:$0xff]
    %v310 = vld [vmem:[%s308 + $0x8] sm:$0xff]
    %v311 = vld [vmem:[%s308 + $0x10] sm:$0xff]
    %v312 = vld [vmem:[%s308 + $0x18] sm:$0xff]
    %v313 = vld [vmem:[%s308 + $0x20] sm:$0xff]
    %v314 = vld [vmem:[%s308 + $0x28] sm:$0xff]
    %v315 = vld [vmem:[%s308 + $0x30] sm:$0xff]
    %v316 = vld [vmem:[%s308 + $0x38] sm:$0xff]
    %v317 = vld [vmem:[%s308 + $0x40] sm:$0xff]
    %v318 = vld [vmem:[%s308 + $0x48] sm:$0xff]
    %v319 = vld [vmem:[%s308 + $0x50] sm:$0xff]
    %v320 = vld [vmem:[%s308 + $0x58] sm:$0xff]
    %v321 = vld [vmem:[%s308 + $0x60] sm:$0xff]
    %v322 = vld [vmem:[%s308 + $0x68] sm:$0xff]
    %v323 = vld [vmem:[%s308 + $0x70] sm:$0xff]
    %v324 = vld [vmem:[%s308 + $0x78] sm:$0xff]
    %s325 = scalar_lea.vmem %s4, 1
    %v326 = vld [vmem:[%s325] sm:$0x1]
    %s327 = scalar_lea.vmem %s5, 1
    %v328 = vld [vmem:[%s327] sm:$0x1]
    %s329 = scalar_lea.vmem %s6, 1
    %v330 = vld [vmem:[%s329] sm:$0x1]
    %v332 = vlaneseq
    %v333 = vshrl.u32 %v332, 7
    %v334 = vsub.s32 0, %v333
    %v335 = vrot.slane %v307, %v334
    %337 = vmatprep.subr.mxu0 0.0
    %338 = vmatpush1.msra.mxu0 %v290
    %339 = vmatprep.subr.mxu0 0.0
    %340 = vmatpush1.msra.mxu0 %v291
    %341 = vmatprep.subr.mxu0 0.0
    %342 = vmatpush1.msra.mxu0 %v292
    %343 = vmatprep.subr.mxu0 0.0
    %344 = vmatpush1.msra.mxu0 %v293
    %345 = vmatprep.subr.mxu0 0.0
    %346 = vmatpush1.msra.mxu0 %v294
    %347 = vmatprep.subr.mxu0 0.0
    %348 = vmatpush1.msra.mxu0 %v295
    %349 = vmatprep.subr.mxu0 0.0
    %350 = vmatpush1.msra.mxu0 %v296
    %351 = vmatprep.subr.mxu0 0.0
    %352 = vmatpush1.msra.mxu0 %v297
    %353 = vmatprep.subr.mxu0 0.0
    %354 = vmatpush1.msra.mxu0 %v298
    %355 = vmatprep.subr.mxu0 0.0
    %356 = vmatpush1.msra.mxu0 %v299
    %357 = vmatprep.subr.mxu0 0.0
    %358 = vmatpush1.msra.mxu0 %v300
    %359 = vmatprep.subr.mxu0 0.0
    %360 = vmatpush1.msra.mxu0 %v301
    %361 = vmatprep.subr.mxu0 0.0
    %362 = vmatpush1.msra.mxu0 %v302
    %363 = vmatprep.subr.mxu0 0.0
    %364 = vmatpush1.msra.mxu0 %v303
    %365 = vmatprep.subr.mxu0 0.0
    %366 = vmatpush1.msra.mxu0 %v304
    %367 = vmatprep.subr.mxu0 0.0
    %368 = vmatpush1.msra.mxu0 %v305
    %369 = vmatprep.subr.mxu0 0.0
    %370 = vmatpush1.msra.mxu0 0.0
    %371 = vmatprep.subr.mxu0 0.0
    %372 = vmatpush1.msra.mxu0 0.0
    %373 = vmatprep.subr.mxu0 0.0
    %374 = vmatpush1.msra.mxu0 0.0
    %375 = vmatprep.subr.mxu0 0.0
    %376 = vmatpush1.msra.mxu0 0.0
    %377 = vmatprep.subr.mxu0 0.0
    %378 = vmatpush1.msra.mxu0 0.0
    %379 = vmatprep.subr.mxu0 0.0
    %380 = vmatpush1.msra.mxu0 0.0
    %381 = vmatprep.subr.mxu0 0.0
    %382 = vmatpush1.msra.mxu0 0.0
    %383 = vmatprep.subr.mxu0 0.0
    %384 = vmatpush1.msra.mxu0 0.0
    %385 = vmatprep.subr.mxu0 0.0
    %386 = vmatpush1.msra.mxu0 0.0
    %387 = vmatprep.subr.mxu0 0.0
    %388 = vmatpush1.msra.mxu0 0.0
    %389 = vmatprep.subr.mxu0 0.0
    %390 = vmatpush1.msra.mxu0 0.0
    %391 = vmatprep.subr.mxu0 0.0
    %392 = vmatpush1.msra.mxu0 0.0
    %393 = vmatprep.subr.mxu0 0.0
    %394 = vmatpush1.msra.mxu0 0.0
    %395 = vmatprep.subr.mxu0 0.0
    %396 = vmatpush1.msra.mxu0 0.0
    %397 = vmatprep.subr.mxu0 0.0
    %398 = vmatpush1.msra.mxu0 0.0
    %399 = vmatprep.subr.mxu0 0.0
    %400 = vmatpush1.msra.mxu0 0.0
    %401 = vmatprep.mubr.f32.mxu0 0.0
    %402 = vmatmul.mubr.f32.gmra.mrb[0].mxu0 %v288
    %v403 = vpop.f32.mrb[0].mxu0
    %v404 = vadd.f32 %v335, %v403
    %v405 = vpop.f32.mrb[0].mxu0
    %406 = vdwg.mxu0
    %v407 = vmax.f32 %v404, 0.0
    %v409 = vlaneseq
    %v410 = vshrl.u32 %v409, 7
    %v411 = vsub.s32 0, %v410
    %v412 = vrot.slane %v326, %v411
    %414 = vmatprep.subr.mxu0 0.0
    %415 = vmatpush1.msra.mxu0 %v309
    %416 = vmatprep.subr.mxu0 0.0
    %417 = vmatpush1.msra.mxu0 %v310
    %418 = vmatprep.subr.mxu0 0.0
    %419 = vmatpush1.msra.mxu0 %v311
    %420 = vmatprep.subr.mxu0 0.0
    %421 = vmatpush1.msra.mxu0 %v312
    %422 = vmatprep.subr.mxu0 0.0
    %423 = vmatpush1.msra.mxu0 %v313
    %424 = vmatprep.subr.mxu0 0.0
    %425 = vmatpush1.msra.mxu0 %v314
    %426 = vmatprep.subr.mxu0 0.0
    %427 = vmatpush1.msra.mxu0 %v315
    %428 = vmatprep.subr.mxu0 0.0
    %429 = vmatpush1.msra.mxu0 %v316
    %430 = vmatprep.subr.mxu0 0.0
    %431 = vmatpush1.msra.mxu0 %v317
    %432 = vmatprep.subr.mxu0 0.0
    %433 = vmatpush1.msra.mxu0 %v318
    %434 = vmatprep.subr.mxu0 0.0
    %435 = vmatpush1.msra.mxu0 %v319
    %436 = vmatprep.subr.mxu0 0.0
    %437 = vmatpush1.msra.mxu0 %v320
    %438 = vmatprep.subr.mxu0 0.0
    %439 = vmatpush1.msra.mxu0 %v321
    %440 = vmatprep.subr.mxu0 0.0
    %441 = vmatpush1.msra.mxu0 %v322
    %442 = vmatprep.subr.mxu0 0.0
    %443 = vmatpush1.msra.mxu0 %v323
    %444 = vmatprep.subr.mxu0 0.0
    %445 = vmatpush1.msra.mxu0 %v324
    %446 = vmatprep.subr.mxu0 0.0
    %447 = vmatpush1.msra.mxu0 0.0
    %448 = vmatprep.subr.mxu0 0.0
    %449 = vmatpush1.msra.mxu0 0.0
    %450 = vmatprep.subr.mxu0 0.0
    %451 = vmatpush1.msra.mxu0 0.0
    %452 = vmatprep.subr.mxu0 0.0
    %453 = vmatpush1.msra.mxu0 0.0
    %454 = vmatprep.subr.mxu0 0.0
    %455 = vmatpush1.msra.mxu0 0.0
    %456 = vmatprep.subr.mxu0 0.0
    %457 = vmatpush1.msra.mxu0 0.0
    %458 = vmatprep.subr.mxu0 0.0
    %459 = vmatpush1.msra.mxu0 0.0
    %460 = vmatprep.subr.mxu0 0.0
    %461 = vmatpush1.msra.mxu0 0.0
    %462 = vmatprep.subr.mxu0 0.0
    %463 = vmatpush1.msra.mxu0 0.0
    %464 = vmatprep.subr.mxu0 0.0
    %465 = vmatpush1.msra.mxu0 0.0
    %466 = vmatprep.subr.mxu0 0.0
    %467 = vmatpush1.msra.mxu0 0.0
    %468 = vmatprep.subr.mxu0 0.0
    %469 = vmatpush1.msra.mxu0 0.0
    %470 = vmatprep.subr.mxu0 0.0
    %471 = vmatpush1.msra.mxu0 0.0
    %472 = vmatprep.subr.mxu0 0.0
    %473 = vmatpush1.msra.mxu0 0.0
    %474 = vmatprep.subr.mxu0 0.0
    %475 = vmatpush1.msra.mxu0 0.0
    %476 = vmatprep.subr.mxu0 0.0
    %477 = vmatpush1.msra.mxu0 0.0
    %478 = vmatprep.mubr.f32.mxu0 0.0
    %479 = vmatmul.mubr.f32.gmra.mrb[0].mxu0 %v407
    %v480 = vpop.f32.mrb[0].mxu0
    %v481 = vadd.f32 %v412, %v480
    %v482 = vpop.f32.mrb[0].mxu0
    %483 = vdwg.mxu0
    %vm484 = vcmp.lt.s32.totalorder %v257, 64
    %v485 = vsel %vm484, 1, 0
    %v486 = vcvt.s32.f32 %v485
    %487 = vadd.xlane.f32.xlu0 %v481
    %v488 = vpop.xlane.xlu0 %487
    %v489 = vmul.f32 %v488, 0.015625
    %v490 = vsub.f32 %v481, %v489
    %v491 = vmul.f32 %v490, %v486
    %v492 = vmul.f32 %v491, %v491
    %493 = vadd.xlane.f32.xlu0 %v492
    %v494 = vpop.xlane.xlu0 %493
    %v495 = vmul.f32 %v494, 0.015625
    %v496 = vadd.f32 %v495, 1e-05
    %v497 = vrsqrt.pop %v496
    %v498 = vmul.f32 %v491, %v497
    %v500 = vlaneseq
    %v501 = vshrl.u32 %v500, 7
    %v502 = vsub.s32 0, %v501
    %v503 = vrot.slane %v328, %v502
    %v505 = vmul.f32 %v498, %v503
    %v507 = vlaneseq
    %v508 = vshrl.u32 %v507, 7
    %v509 = vsub.s32 0, %v508
    %v510 = vrot.slane %v330, %v509
    %v512 = vadd.f32 %v505, %v510
    %v513 = vmax.f32 %v512, 0.0
    %s514 = scalar_lea.vmem [#allocation5], 256
    %v515 = vld [vmem:[%s514] sm:$0xff]
    %v516 = vld [vmem:[%s514 + $0x8] sm:$0xff]
    %v517 = vld [vmem:[%s514 + $0x10] sm:$0xff]
    %v518 = vld [vmem:[%s514 + $0x18] sm:$0xff]
    %v519 = vld [vmem:[%s514 + $0x20] sm:$0xff]
    %v520 = vld [vmem:[%s514 + $0x28] sm:$0xff]
    %v521 = vld [vmem:[%s514 + $0x30] sm:$0xff]
    %v522 = vld [vmem:[%s514 + $0x38] sm:$0xff]
    %v523 = vld [vmem:[%s514 + $0x40] sm:$0xff]
    %v524 = vld [vmem:[%s514 + $0x48] sm:$0xff]
    %v525 = vld [vmem:[%s514 + $0x50] sm:$0xff]
    %v526 = vld [vmem:[%s514 + $0x58] sm:$0xff]
    %v527 = vld [vmem:[%s514 + $0x60] sm:$0xff]
    %v528 = vld [vmem:[%s514 + $0x68] sm:$0xff]
    %v529 = vld [vmem:[%s514 + $0x70] sm:$0xff]
    %v530 = vld [vmem:[%s514 + $0x78] sm:$0xff]
    %s531 = scalar_lea.vmem %s2, 2
    %v532 = vld [vmem:[%s531] sm:$0x1]
    %s533 = scalar_lea.vmem [#allocation7], 256
    %v534 = vld [vmem:[%s533] sm:$0xff]
    %v535 = vld [vmem:[%s533 + $0x8] sm:$0xff]
    %v536 = vld [vmem:[%s533 + $0x10] sm:$0xff]
    %v537 = vld [vmem:[%s533 + $0x18] sm:$0xff]
    %v538 = vld [vmem:[%s533 + $0x20] sm:$0xff]
    %v539 = vld [vmem:[%s533 + $0x28] sm:$0xff]
    %v540 = vld [vmem:[%s533 + $0x30] sm:$0xff]
    %v541 = vld [vmem:[%s533 + $0x38] sm:$0xff]
    %v542 = vld [vmem:[%s533 + $0x40] sm:$0xff]
    %v543 = vld [vmem:[%s533 + $0x48] sm:$0xff]
    %v544 = vld [vmem:[%s533 + $0x50] sm:$0xff]
    %v545 = vld [vmem:[%s533 + $0x58] sm:$0xff]
    %v546 = vld [vmem:[%s533 + $0x60] sm:$0xff]
    %v547 = vld [vmem:[%s533 + $0x68] sm:$0xff]
    %v548 = vld [vmem:[%s533 + $0x70] sm:$0xff]
    %v549 = vld [vmem:[%s533 + $0x78] sm:$0xff]
    %s550 = scalar_lea.vmem %s4, 2
    %v551 = vld [vmem:[%s550] sm:$0x1]
    %s552 = scalar_lea.vmem %s5, 2
    %v553 = vld [vmem:[%s552] sm:$0x1]
    %s554 = scalar_lea.vmem %s6, 2
    %v555 = vld [vmem:[%s554] sm:$0x1]
    %v557 = vlaneseq
    %v558 = vshrl.u32 %v557, 7
    %v559 = vsub.s32 0, %v558
    %v560 = vrot.slane %v532, %v559
    %562 = vmatprep.subr.mxu0 0.0
    %563 = vmatpush1.msra.mxu0 %v515
    %564 = vmatprep.subr.mxu0 0.0
    %565 = vmatpush1.msra.mxu0 %v516
    %566 = vmatprep.subr.mxu0 0.0
    %567 = vmatpush1.msra.mxu0 %v517
    %568 = vmatprep.subr.mxu0 0.0
    %569 = vmatpush1.msra.mxu0 %v518
    %570 = vmatprep.subr.mxu0 0.0
    %571 = vmatpush1.msra.mxu0 %v519
    %572 = vmatprep.subr.mxu0 0.0
    %573 = vmatpush1.msra.mxu0 %v520
    %574 = vmatprep.subr.mxu0 0.0
    %575 = vmatpush1.msra.mxu0 %v521
    %576 = vmatprep.subr.mxu0 0.0
    %577 = vmatpush1.msra.mxu0 %v522
    %578 = vmatprep.subr.mxu0 0.0
    %579 = vmatpush1.msra.mxu0 %v523
    %580 = vmatprep.subr.mxu0 0.0
    %581 = vmatpush1.msra.mxu0 %v524
    %582 = vmatprep.subr.mxu0 0.0
    %583 = vmatpush1.msra.mxu0 %v525
    %584 = vmatprep.subr.mxu0 0.0
    %585 = vmatpush1.msra.mxu0 %v526
    %586 = vmatprep.subr.mxu0 0.0
    %587 = vmatpush1.msra.mxu0 %v527
    %588 = vmatprep.subr.mxu0 0.0
    %589 = vmatpush1.msra.mxu0 %v528
    %590 = vmatprep.subr.mxu0 0.0
    %591 = vmatpush1.msra.mxu0 %v529
    %592 = vmatprep.subr.mxu0 0.0
    %593 = vmatpush1.msra.mxu0 %v530
    %594 = vmatprep.subr.mxu0 0.0
    %595 = vmatpush1.msra.mxu0 0.0
    %596 = vmatprep.subr.mxu0 0.0
    %597 = vmatpush1.msra.mxu0 0.0
    %598 = vmatprep.subr.mxu0 0.0
    %599 = vmatpush1.msra.mxu0 0.0
    %600 = vmatprep.subr.mxu0 0.0
    %601 = vmatpush1.msra.mxu0 0.0
    %602 = vmatprep.subr.mxu0 0.0
    %603 = vmatpush1.msra.mxu0 0.0
    %604 = vmatprep.subr.mxu0 0.0
    %605 = vmatpush1.msra.mxu0 0.0
    %606 = vmatprep.subr.mxu0 0.0
    %607 = vmatpush1.msra.mxu0 0.0
    %608 = vmatprep.subr.mxu0 0.0
    %609 = vmatpush1.msra.mxu0 0.0
    %610 = vmatprep.subr.mxu0 0.0
    %611 = vmatpush1.msra.mxu0 0.0
    %612 = vmatprep.subr.mxu0 0.0
    %613 = vmatpush1.msra.mxu0 0.0
    %614 = vmatprep.subr.mxu0 0.0
    %615 = vmatpush1.msra.mxu0 0.0
    %616 = vmatprep.subr.mxu0 0.0
    %617 = vmatpush1.msra.mxu0 0.0
    %618 = vmatprep.subr.mxu0 0.0
    %619 = vmatpush1.msra.mxu0 0.0
    %620 = vmatprep.subr.mxu0 0.0
    %621 = vmatpush1.msra.mxu0 0.0
    %622 = vmatprep.subr.mxu0 0.0
    %623 = vmatpush1.msra.mxu0 0.0
    %624 = vmatprep.subr.mxu0 0.0
    %625 = vmatpush1.msra.mxu0 0.0
    %626 = vmatprep.mubr.f32.mxu0 0.0
    %627 = vmatmul.mubr.f32.gmra.mrb[0].mxu0 %v513
    %v628 = vpop.f32.mrb[0].mxu0
    %v629 = vadd.f32 %v560, %v628
    %v630 = vpop.f32.mrb[0].mxu0
    %631 = vdwg.mxu0
    %v632 = vmax.f32 %v629, 0.0
    %v634 = vlaneseq
    %v635 = vshrl.u32 %v634, 7
    %v636 = vsub.s32 0, %v635
    %v637 = vrot.slane %v551, %v636
    %639 = vmatprep.subr.mxu0 0.0
    %640 = vmatpush1.msra.mxu0 %v534
    %641 = vmatprep.subr.mxu0 0.0
    %642 = vmatpush1.msra.mxu0 %v535
    %643 = vmatprep.subr.mxu0 0.0
    %644 = vmatpush1.msra.mxu0 %v536
    %645 = vmatprep.subr.mxu0 0.0
    %646 = vmatpush1.msra.mxu0 %v537
    %647 = vmatprep.subr.mxu0 0.0
    %648 = vmatpush1.msra.mxu0 %v538
    %649 = vmatprep.subr.mxu0 0.0
    %650 = vmatpush1.msra.mxu0 %v539
    %651 = vmatprep.subr.mxu0 0.0
    %652 = vmatpush1.msra.mxu0 %v540
    %653 = vmatprep.subr.mxu0 0.0
    %654 = vmatpush1.msra.mxu0 %v541
    %655 = vmatprep.subr.mxu0 0.0
    %656 = vmatpush1.msra.mxu0 %v542
    %657 = vmatprep.subr.mxu0 0.0
    %658 = vmatpush1.msra.mxu0 %v543
    %659 = vmatprep.subr.mxu0 0.0
    %660 = vmatpush1.msra.mxu0 %v544
    %661 = vmatprep.subr.mxu0 0.0
    %662 = vmatpush1.msra.mxu0 %v545
    %663 = vmatprep.subr.mxu0 0.0
    %664 = vmatpush1.msra.mxu0 %v546
    %665 = vmatprep.subr.mxu0 0.0
    %666 = vmatpush1.msra.mxu0 %v547
    %667 = vmatprep.subr.mxu0 0.0
    %668 = vmatpush1.msra.mxu0 %v548
    %669 = vmatprep.subr.mxu0 0.0
    %670 = vmatpush1.msra.mxu0 %v549
    %671 = vmatprep.subr.mxu0 0.0
    %672 = vmatpush1.msra.mxu0 0.0
    %673 = vmatprep.subr.mxu0 0.0
    %674 = vmatpush1.msra.mxu0 0.0
    %675 = vmatprep.subr.mxu0 0.0
    %676 = vmatpush1.msra.mxu0 0.0
    %677 = vmatprep.subr.mxu0 0.0
    %678 = vmatpush1.msra.mxu0 0.0
    %679 = vmatprep.subr.mxu0 0.0
    %680 = vmatpush1.msra.mxu0 0.0
    %681 = vmatprep.subr.mxu0 0.0
    %682 = vmatpush1.msra.mxu0 0.0
    %683 = vmatprep.subr.mxu0 0.0
    %684 = vmatpush1.msra.mxu0 0.0
    %685 = vmatprep.subr.mxu0 0.0
    %686 = vmatpush1.msra.mxu0 0.0
    %687 = vmatprep.subr.mxu0 0.0
    %688 = vmatpush1.msra.mxu0 0.0
    %689 = vmatprep.subr.mxu0 0.0
    %690 = vmatpush1.msra.mxu0 0.0
    %691 = vmatprep.subr.mxu0 0.0
    %692 = vmatpush1.msra.mxu0 0.0
    %693 = vmatprep.subr.mxu0 0.0
    %694 = vmatpush1.msra.mxu0 0.0
    %695 = vmatprep.subr.mxu0 0.0
    %696 = vmatpush1.msra.mxu0 0.0
    %697 = vmatprep.subr.mxu0 0.0
    %698 = vmatpush1.msra.mxu0 0.0
    %699 = vmatprep.subr.mxu0 0.0
    %700 = vmatpush1.msra.mxu0 0.0
    %701 = vmatprep.subr.mxu0 0.0
    %702 = vmatpush1.msra.mxu0 0.0
    %703 = vmatprep.mubr.f32.mxu0 0.0
    %704 = vmatmul.mubr.f32.gmra.mrb[0].mxu0 %v632
    %v705 = vpop.f32.mrb[0].mxu0
    %v706 = vadd.f32 %v637, %v705
    %v707 = vpop.f32.mrb[0].mxu0
    %708 = vdwg.mxu0
    %709 = vadd.xlane.f32.xlu0 %v706
    %v710 = vpop.xlane.xlu0 %709
    %v711 = vmul.f32 %v710, 0.015625
    %v712 = vsub.f32 %v706, %v711
    %v713 = vmul.f32 %v712, %v486
    %v714 = vmul.f32 %v713, %v713
    %715 = vadd.xlane.f32.xlu0 %v714
    %v716 = vpop.xlane.xlu0 %715
    %v717 = vmul.f32 %v716, 0.015625
    %v718 = vadd.f32 %v717, 1e-05
    %v719 = vrsqrt.pop %v718
    %v720 = vmul.f32 %v713, %v719
    %v722 = vlaneseq
    %v723 = vshrl.u32 %v722, 7
    %v724 = vsub.s32 0, %v723
    %v725 = vrot.slane %v553, %v724
    %v727 = vmul.f32 %v720, %v725
    %v729 = vlaneseq
    %v730 = vshrl.u32 %v729, 7
    %v731 = vsub.s32 0, %v730
    %v732 = vrot.slane %v555, %v731
    %v734 = vadd.f32 %v727, %v732
    %v735 = vadd.f32 %v734, %v513
    %v736 = vmax.f32 %v735, 0.0
    %737 = vst [vmem:[#allocation8] sm:$0xff] %v736
    // Predicated region
    $region42: #{tpu_custom_call.1} parent=1 // pred_check
      _
    $region43: #{tpu_custom_call.1} parent=1 // pred_check_branch
      %739 = sbr.rel (0) target = $region45
    $region44: #{tpu_custom_call.1} parent=1 // pred_region
      %s741 = ssub.s32 128, 128
      %742 = vsyncadd [#allocation4], %s741
      %s744 = sshll.u32 [#allocation8], 4
      %s745 = int_to_ptr.vmem [resolvable:$true] %s744
      %747 = dma.vmem_to_hbm [thread:$0]  %s745, 128, %s7, [#allocation4]
    $region45: #{tpu_custom_call.1} parent=1 // pred_fallthru
      _
    // Predicated region
    $region46: #{tpu_custom_call.1} parent=1 // pred_check
      _
    $region47: #{tpu_custom_call.1} parent=1 // pred_check_branch
      %749 = sbr.rel (0) target = $region49
    $region48: #{tpu_custom_call.1} parent=1 // pred_region
      %750 = dma.done [#allocation4], 128
    $region49: #{tpu_custom_call.1} parent=1 // pred_fallthru
      _
    %751 = vsyncpa [#allocation3], 1
    %752 = vsyncpa [#allocation6], 1
    %753 = vsyncpa [#allocation4], 1

</llo_original>
